<compile_context>
chip_gen: v7x
topology: tpu7x:2x2x1
jax: 0.10.0
libtpu: 0.0.40
codegen_flags: <defaults>
</compile_context>

<pallas_src>
import jax
import jax.numpy as jnp
from jax.experimental import pallas as pl
from jax.experimental.pallas import tpu as pltpu


def _round_up(x, m):
    return ((x + m - 1) // m) * m


def _cross_entropy_rows_kernel(logits_ref, labels_ref, nll_ref):
    # logits_ref: (TM, C) in native dtype, labels_ref: (TM, 1) int32,
    # nll_ref: (TM, 1) f32 -- per-row negative log-likelihood.
    logits = logits_ref[...].astype(jnp.float32)                    # (TM, C)
    labels = labels_ref[...]                                        # (TM, 1)

    # Numerically stable logsumexp per row: max/sum go to the XLU, exp to the EUP.
    row_max = jnp.max(logits, axis=-1, keepdims=True)               # (TM, 1)
    lse = row_max + jnp.log(
        jnp.sum(jnp.exp(logits - row_max), axis=-1, keepdims=True)) # (TM, 1)

    # Gather the target-class logit with iota compare + select (no one-hot
    # multiply, no MXU): picked[r] = logits[r, labels[r]].
    cls_idx = jax.lax.broadcasted_iota(jnp.int32, logits.shape, 1)  # (TM, C)
    picked = jnp.sum(jnp.where(cls_idx == labels, logits, 0.0),
                     axis=-1, keepdims=True)                        # (TM, 1)

    nll_ref[...] = lse - picked


def cross_entropy_loss(logits, labels, *, block_rows=None):
    """Equivalent of nn.CrossEntropyLoss()(logits, labels), mean reduction.

    logits: (N, C) float array (f32 or bf16) of unnormalized class scores.
    labels: (N,) int array of class indices in [0, C).
    Returns a scalar float32.
    """
    N, C = logits.shape
    labels2d = labels.astype(jnp.int32).reshape(N, 1)

    if block_rows is None:
        # Size TM so 2x-buffered (logits tile + lane-padded labels tile) stays
        # ~<= 20 MiB -> safe under the v7x 32 MiB scoped / 64 MiB physical VMEM,
        # and trivially safe on v5e / v6e.
        budget_bytes = 20 * 1024 * 1024
        itemsize = jnp.dtype(logits.dtype).itemsize
        bytes_per_row = 2 * (C * itemsize + 512)  # logits + int32 labels (lane-padded)
        tm = max(8, min(512, budget_bytes // max(bytes_per_row, 1)))
    else:
        tm = block_rows
    tm = min(tm, _round_up(N, 8))
    tm = max(8, (tm // 8) * 8)

    grid = (pl.cdiv(N, tm),)

    nll = pl.pallas_call(
        _cross_entropy_rows_kernel,
        out_shape=jax.ShapeDtypeStruct((N, 1), jnp.float32),
        grid_spec=pltpu.PrefetchScalarGridSpec(
            num_scalar_prefetch=0,
            grid=grid,
            in_specs=[
                pl.BlockSpec((tm, C), lambda i: (i, 0)),   # logits row tile
                pl.BlockSpec((tm, 1), lambda i: (i, 0)),   # labels row tile
            ],
            out_specs=pl.BlockSpec((tm, 1), lambda i: (i, 0)),
        ),
        compiler_params=pltpu.CompilerParams(
            dimension_semantics=("parallel",),             # row tiles independent
            vmem_limit_bytes=48 * 1024 * 1024,
        ),
    )(logits, labels2d)

    # Tiny final reduction (N floats) in plain JAX; exact divisor N.
    return jnp.mean(nll[:, 0])


def _reference(logits, labels):
    logits = logits.astype(jnp.float32)
    lse = jax.nn.logsumexp(logits, axis=-1)
    picked = jnp.take_along_axis(logits, labels[:, None].astype(jnp.int32),
                                 axis=-1)[:, 0]
    return jnp.mean(lse - picked)


if __name__ == "__main__":
    key = jax.random.PRNGKey(0)
    k1, k2, k3, k4 = jax.random.split(key, 4)

    # Case 1: small shapes per the module spec (batch=8, classes=32), f32.
    N, C = 8, 32
    logits = jax.random.normal(k1, (N, C), dtype=jnp.float32)
    labels = jax.random.randint(k2, (N,), 0, C, dtype=jnp.int32)
    pred = {"pred": logits}                      # mirror the torch dict interface
    loss = cross_entropy_loss(pred["pred"], labels)
    loss = jax.block_until_ready(loss)
    ref = _reference(logits, labels)
    assert jnp.allclose(loss, ref, atol=1e-5, rtol=1e-5), (loss, ref)

    # Case 2: multi-tile grid + bf16 streaming path (block_rows forces 4 tiles).
    N2, C2 = 64, 128
    logits2 = jax.random.normal(k3, (N2, C2), dtype=jnp.float32).astype(jnp.bfloat16)
    labels2 = jax.random.randint(k4, (N2,), 0, C2, dtype=jnp.int32)
    loss2 = cross_entropy_loss(logits2, labels2, block_rows=16)
    loss2 = jax.block_until_ready(loss2)
    ref2 = _reference(logits2, labels2)
    assert jnp.allclose(loss2, ref2, atol=1e-4, rtol=1e-4), (loss2, ref2)

    print("KERNEL_OK")
</pallas_src>

<mosaic_0001>
module attributes {stable_mosaic.version = 11 : i64} {
  func.func @_cross_entropy_rows_kernel(%arg0: i32, %arg1: memref<8x32xf32, #tpu.memory_space<vmem>>, %arg2: memref<8x1xi32, #tpu.memory_space<vmem>>, %arg3: memref<8x1xf32, #tpu.memory_space<vmem>>) attributes {dimension_semantics = [#tpu.dimension_semantics<parallel>], iteration_bounds = array<i64: 1>, scalar_prefetch = 0 : i64, scratch_operands = 0 : i64, tpu.core_type = #tpu.core_type<tc>, window_params = [{transform_indices = @transform_0, window_bounds = array<i64: 8, 32>}, {transform_indices = @transform_1, window_bounds = array<i64: 8, 1>}, {transform_indices = @transform_2, window_bounds = array<i64: 8, 1>}]} {
    %c0 = arith.constant 0 : index
    %c0_0 = arith.constant 0 : index
    %0 = vector.load %arg1[%c0, %c0_0] : memref<8x32xf32, #tpu.memory_space<vmem>>, vector<8x32xf32>
    %c0_1 = arith.constant 0 : index
    %c0_2 = arith.constant 0 : index
    %1 = vector.load %arg2[%c0_1, %c0_2] : memref<8x1xi32, #tpu.memory_space<vmem>>, vector<8x1xi32>
    %cst = arith.constant dense<0xFF800000> : vector<8xf32>
    %2 = vector.multi_reduction <maximumf>, %0, %cst [1] : vector<8x32xf32> to vector<8xf32>
    %3 = vector.shape_cast %2 : vector<8xf32> to vector<8x1xf32>
    %4 = vector.broadcast %3 : vector<8x1xf32> to vector<8x32xf32>
    %5 = arith.subf %0, %4 : vector<8x32xf32>
    %6 = math.exp %5 : vector<8x32xf32>
    %cst_3 = arith.constant dense<0.000000e+00> : vector<8xf32>
    %7 = vector.multi_reduction <add>, %6, %cst_3 [1] : vector<8x32xf32> to vector<8xf32>
    %8 = vector.shape_cast %7 : vector<8xf32> to vector<8x1xf32>
    %9 = math.log %8 : vector<8x1xf32>
    %10 = arith.addf %3, %9 : vector<8x1xf32>
    %11 = tpu.iota {dimensions = array<i32: 1>} : vector<8x32xi32>
    %12 = vector.broadcast %1 : vector<8x1xi32> to vector<8x32xi32>
    %13 = arith.cmpi eq, %11, %12 : vector<8x32xi32>
    %cst_4 = arith.constant 0.000000e+00 : f32
    %14 = vector.broadcast %cst_4 : f32 to vector<8x32xf32>
    %15 = arith.select %13, %0, %14 : vector<8x32xi1>, vector<8x32xf32>
    %cst_5 = arith.constant dense<0.000000e+00> : vector<8xf32>
    %16 = vector.multi_reduction <add>, %15, %cst_5 [1] : vector<8x32xf32> to vector<8xf32>
    %17 = vector.shape_cast %16 : vector<8xf32> to vector<8x1xf32>
    %18 = arith.subf %10, %17 : vector<8x1xf32>
    %c0_6 = arith.constant 0 : index
    %c0_7 = arith.constant 0 : index
    %19 = vector.load %arg3[%c0_6, %c0_7] : memref<8x1xf32, #tpu.memory_space<vmem>>, vector<8x1xf32>
    tpu.vector_store %arg3[%c0_6, %c0_7], %18 {strides = array<i32>} : memref<8x1xf32, #tpu.memory_space<vmem>>, vector<8x1xf32>,
    return
  }
  func.func @transform_0(%arg0: i32) -> (i32, i32) {
    %c0_i32 = arith.constant 0 : i32
    %c0_i32_0 = arith.constant 0 : i32
    return %arg0, %c0_i32 : i32, i32
  }
  func.func @transform_1(%arg0: i32) -> (i32, i32) {
    %c0_i32 = arith.constant 0 : i32
    %c0_i32_0 = arith.constant 0 : i32
    return %arg0, %c0_i32 : i32, i32
  }
  func.func @transform_2(%arg0: i32) -> (i32, i32) {
    %c0_i32 = arith.constant 0 : i32
    %c0_i32_0 = arith.constant 0 : i32
    return %arg0, %c0_i32 : i32, i32
  }
}

</mosaic_0001>

<llo_original>
// kernel: tpu_custom_call.1
$region0: #{tpu_custom_call.1}
  #allocation0 [shape = 'u32[]', space=smem, size = 0x4, offset = 0x4, fixed_abs, tag = 'smem constant byte address 0x4 - core index']
  #allocation1 [shape = 'u32[144,128]{1,0:T(1,128)}', space=vmem, size = 0x12000, scoped, tag = 'internal scratch']
  %s0 = inlined_call_operand.vmem [shape: f32[8,32], index: 0, kind: input, shape index: {}]
  %s1 = inlined_call_operand.vmem [shape: s32[8,1], index: 1, kind: input, shape index: {}]
  %s2 = inlined_call_operand.vmem [shape: f32[8,1], index: 2, kind: output, shape index: {}]
  %s3 = sld [smem:[#allocation0]]
  $region18: #{tpu_custom_call.1} parent=0
    _
  %s5 = ssub.s32 1, %s3
  %s6 = scalar_select 0, %s5, %s3
  // Predicated region
  $region2: #{tpu_custom_call.1} parent=0 // pred_check
    _
  $region3: #{tpu_custom_call.1} parent=0 // pred_check_branch
    %8 = sbr.rel (0) target = $region5
  $region4: #{tpu_custom_call.1} parent=0 // pred_region
    _
  $region5: #{tpu_custom_call.1} parent=0 // pred_fallthru
    _
  // Predicated region
  $region6: #{tpu_custom_call.1} parent=0 // pred_check
    _
  $region7: #{tpu_custom_call.1} parent=0 // pred_check_branch
    %10 = sbr.rel (0) target = $region9
  $region8: #{tpu_custom_call.1} parent=0 // pred_region
    _
  $region9: #{tpu_custom_call.1} parent=0 // pred_fallthru
    _
  %v11 = vld [vmem:[%s0] sm:$0xff]
  %v12 = vld [vmem:[%s1] sm:$0xff]
  %vm13 = vcmask 261120
  %v14 = vsel %vm13, %v11, -inf
  %15 = vmax.xlane.f32.xlu0 %v14
  %v16 = vpop.xlane.xlu0 %15
  %v17 = vsub.f32 %v11, %v16
  %v18 = vmul.f32 %v17, 1.442695
  %v19 = vpow.pop %v18
  %v20 = vsel %vm13, %v19, 0.0
  %21 = vadd.xlane.f32.xlu0 %v20
  %v22 = vpop.xlane.xlu0 %21
  %v23 = vlog2.pop %v22
  %v24 = vmul.f32 %v23, 0.6931472
  %v25 = vadd.f32 %v16, %v24
  %v26 = vlaneseq
  %v27 = vand.u32 %v26, 127
  %28 = vset.pattern.permute.xlu0 0
  %29 = vperm.xlu0 %28, %v12
  %v30 = vpop.permute.xlu0 %29
  %vm31 = vcmp.eq.s32.totalorder %v27, %v30
  %v32 = vsel %vm31, %v11, 0.0
  %v33 = vsel %vm13, %v32, 0.0
  %34 = vadd.xlane.f32.xlu0 %v33
  %v35 = vpop.xlane.xlu0 %34
  %v36 = vsub.f32 %v25, %v35
  %vm37 = vcmask 7168
  %38 = vst.msk [vmem:[%s2] sm:$0xff] %vm37, %v36
  // Predicated region
  $region10: #{tpu_custom_call.1} parent=0 // pred_check
    _
  $region11: #{tpu_custom_call.1} parent=0 // pred_check_branch
    %40 = sbr.rel (0) target = $region13
  $region12: #{tpu_custom_call.1} parent=0 // pred_region
    _
  $region13: #{tpu_custom_call.1} parent=0 // pred_fallthru
    _
  // Predicated region
  $region14: #{tpu_custom_call.1} parent=0 // pred_check
    _
  $region15: #{tpu_custom_call.1} parent=0 // pred_check_branch
    %42 = sbr.rel (0) target = $region17
  $region16: #{tpu_custom_call.1} parent=0 // pred_region
    _
  $region17: #{tpu_custom_call.1} parent=0 // pred_fallthru
    _

</llo_original>
